<compile_context>
chip_gen: v7x
topology: tpu7x:2x2x1
jax: 0.10.0
libtpu: 0.0.40
codegen_flags: <defaults>
</compile_context>

<pallas_src>
import jax
import jax.numpy as jnp
import numpy as np
from jax.experimental import pallas as pl
from jax.experimental.pallas import tpu as pltpu

LANE = 128


# ----------------------------------------------------------------------------
# Fused kernel factory: im2col-conv3x3 + bias + ReLU + global-average-pool.
#   p_ref : (1, TILE_M, K_PAD)   bf16 im2col patches for TILE_M output pixels
#   w_ref : (K_PAD, C_PAD)       bf16 conv weight (lane-padded out channels)
#   b_ref : (1, C_PAD)           f32  conv bias
#   o_ref : (1, 1, 1, C_PAD)     f32  per-(image, split) pooled channel means
#   acc   : (8, C_PAD)           f32  VMEM scratch: sublane pooling partials
# grid = (N, SPLIT, HT); HT is the pooling reduction axis (output resident).
# ----------------------------------------------------------------------------
def _make_fused_kernel(tile_m, c_pad, per_split, m_valid, inv_m, need_mask):
    def kernel(p_ref, w_ref, b_ref, o_ref, acc_ref):
        t = pl.program_id(2)

        @pl.when(t == 0)
        def _init():
            acc_ref[...] = jnp.zeros_like(acc_ref)

        # One bf16 MXU matmul over the whole 3x3*Cin contraction, f32 accum.
        acc = jnp.dot(p_ref[0], w_ref[...], preferred_element_type=jnp.float32)
        acc = jnp.maximum(acc + b_ref[...], 0.0)        # bias + ReLU (f32 VPU)

        if need_mask:
            # Ragged spatial tail: M was zero-padded; padded rows would add
            # ReLU(bias) to the pool, so mask them out.
            s = pl.program_id(1)
            row = (s * per_split + t * tile_m
                   + jax.lax.broadcasted_iota(jnp.int32, (tile_m, c_pad), 0))
            acc = jnp.where(row < m_valid, acc, 0.0)

        # Partial pooling: fold TILE_M rows into 8 sublane partials. The
        # reshape only splits the major (sublane) dim -> VALU-only vreg adds.
        acc_ref[...] += acc.reshape(tile_m // 8, 8, c_pad).sum(axis=0)

        # Fused epilogue: 8->1 cross-sublane reduce (XLU slot, idle here),
        # mean scaling, and a single lane-dense (1, C_PAD) writeback.
        @pl.when(t == pl.num_programs(2) - 1)
        def _fin():
            o_ref[0, 0] = acc_ref[...].sum(axis=0, keepdims=True) * inv_m

    return kernel


def _choose_tiling(m, max_tile_m, want_split=2, align=16):
    """Pick (split, tile_m, steps_per_split, m_padded) for the spatial axis."""
    for split in (want_split, 1):
        if split < 1 or m % split:
            continue
        per = m // split
        if per % align:
            continue
        t = min(max_tile_m, per)
        t -= t % align
        while t >= align and per % t:
            t -= align
        if t >= align:
            return split, t, per // t, m               # exact, no masking
    # Ragged feature map: one zero-padded tile per image + in-kernel row mask.
    m_pad = -(-m // align) * align
    return 1, m_pad, 1, m_pad


# ----------------------------------------------------------------------------
# conv3x3(SAME) + bias + ReLU + global average pool  ->  (N, Cout)
# ----------------------------------------------------------------------------
def conv3x3_relu_gap(x_nchw, conv_w_oihw, conv_b):
    N, Cin, H, W = x_nchw.shape
    Cout, _, KH, KW = conv_w_oihw.shape
    K = Cin * KH * KW
    M = H * W
    c_pad = ((Cout + LANE - 1) // LANE) * LANE   # lane-dense output channels
    k_pad = -(-K // 8) * 8                       # weight sublane alignment

    # Per-generation VMEM budget (v5e/v6e: 128 MiB, v7x: 64 MiB per TC).
    try:
        vmem_cap = pltpu.get_tpu_info().vmem_capacity_bytes
    except Exception:
        vmem_cap = 64 * 1024 * 1024              # conservative (v7x)
    vmem_limit = min(vmem_cap * 3 // 4, 100 * 1024 * 1024)
    # Largest tile_m whose double-buffered bf16 patch tile stays within a
    # quarter of the budget, capped at 2048 rows per MXU matmul.
    max_tile_m = max(16, min(2048, (vmem_limit // 4) // (2 * k_pad * 2)))
    max_tile_m -= max_tile_m % 16

    split, tile_m, ht, m_pad = _choose_tiling(M, max_tile_m)
    per_split = m_pad // split
    need_mask = m_pad != M

    # im2col feature-last: only the 1x input is transposed to NHWC; the 9x
    # patches tensor comes out directly as (N, H, W, K) -> reshape, no
    # transpose.  Feature ordering is channel-major: f = c*KH*KW + kh*KW + kw
    # (documented behaviour of conv_general_dilated_patches; the f32 XLA
    # reference check below would catch any ordering change).
    x_nhwc = jnp.transpose(x_nchw, (0, 2, 3, 1))
    patches = jax.lax.conv_general_dilated_patches(
        x_nhwc, filter_shape=(KH, KW), window_strides=(1, 1), padding="SAME",
        dimension_numbers=("NHWC", "HWIO", "NHWC"))          # (N, H, W, K)
    patches = patches.reshape(N, M, K).astype(jnp.bfloat16)  # bf16 operands
    if m_pad != M or k_pad != K:
        patches = jnp.pad(patches, ((0, 0), (0, m_pad - M), (0, k_pad - K)))

    # Weights in the same channel-major im2col ordering, bf16, K sublane- and
    # Cout lane-padded.  Bias stays f32 (added after the f32 accumulation).
    w_flat = jnp.transpose(conv_w_oihw, (1, 2, 3, 0)).reshape(K, Cout)
    w_pad = jnp.pad(w_flat.astype(jnp.bfloat16),
                    ((0, k_pad - K), (0, c_pad - Cout)))
    b_pad = jnp.pad(conv_b.reshape(1, Cout).astype(jnp.float32),
                    ((0, 0), (0, c_pad - Cout)))

    kernel = _make_fused_kernel(tile_m, c_pad, per_split, M, 1.0 / M, need_mask)

    sums = pl.pallas_call(
        kernel,
        out_shape=jax.ShapeDtypeStruct((N, split, 1, c_pad), jnp.float32),
        grid=(N, split, ht),
        in_specs=[
            pl.BlockSpec((1, tile_m, k_pad), lambda n, s, t: (n, s * ht + t, 0)),
            # Weight/bias blocks never change; at toy sizes the redundant
            # double-buffer copy is negligible (pl.Buffered(1) only pays off
            # once K/Cout reach real backbone sizes on v7x's 64 MiB VMEM).
            pl.BlockSpec((k_pad, c_pad), lambda n, s, t: (0, 0)),
            pl.BlockSpec((1, c_pad), lambda n, s, t: (0, 0)),
        ],
        out_specs=pl.BlockSpec((1, 1, 1, c_pad), lambda n, s, t: (n, s, 0, 0)),
        scratch_shapes=[pltpu.VMEM((8, c_pad), jnp.float32)],
        compiler_params=pltpu.CompilerParams(
            dimension_semantics=("parallel", "parallel", "arbitrary"),
            vmem_limit_bytes=int(vmem_limit)),
    )(patches, w_pad, b_pad)

    # Tiny wrapper tail: sum the split partials (each already scaled by 1/M)
    # and drop the lane padding.
    return sums.sum(axis=(1, 2))[:, :Cout]                       # (N, Cout)


# ----------------------------------------------------------------------------
# Full forward  (equivalent of _TorchBuiltinModels.forward)
# ----------------------------------------------------------------------------
@jax.jit
def torch_builtin_model_forward(x_nchw, params):
    # pre_transforms: not set (None in __init__) -> identity
    pooled = conv3x3_relu_gap(x_nchw, params["conv_w"], params["conv_b"])
    # Encoder FC + LazyLinear head: matmuls on a tiny (N, Cout) tensor --
    # kept in plain XLA (a dedicated Pallas kernel is pure launch overhead).
    logits = pooled @ params["fc_w"] + params["fc_b"]
    feats = logits @ params["head_w"] + params["head_b"]
    # post_transforms: not set -> identity
    return feats


# Pure-XLA f32 reference of the same forward pass (for correctness check).
def reference_forward(x_nchw, params):
    y = jax.lax.conv_general_dilated(
        x_nchw, params["conv_w"], window_strides=(1, 1), padding="SAME",
        dimension_numbers=("NCHW", "OIHW", "NCHW"),
        precision=jax.lax.Precision.HIGHEST)
    y = jnp.maximum(y + params["conv_b"][None, :, None, None], 0.0)
    pooled = jnp.mean(y, axis=(2, 3))
    logits = pooled @ params["fc_w"] + params["fc_b"]
    return logits @ params["head_w"] + params["head_b"]


def init_params(key, cin, cout, num_classes, feature_size):
    ks = jax.random.split(key, 6)
    return {
        # conv weight stored OIHW like torch.nn.Conv2d
        "conv_w": jax.random.normal(ks[0], (cout, cin, 3, 3), jnp.float32) * 0.1,
        "conv_b": jax.random.normal(ks[1], (cout,), jnp.float32) * 0.1,
        "fc_w": jax.random.normal(ks[2], (cout, num_classes), jnp.float32) * 0.1,
        "fc_b": jax.random.normal(ks[3], (num_classes,), jnp.float32) * 0.1,
        # LazyLinear head: (num_classes -> feature_size)
        "head_w": jax.random.normal(ks[4], (num_classes, feature_size),
                                    jnp.float32) * 0.1,
        "head_b": jax.random.normal(ks[5], (feature_size,), jnp.float32) * 0.1,
    }


if __name__ == "__main__":
    N, CIN, H, W = 2, 4, 16, 16
    COUT, NUM_CLASSES, FEATURE_SIZE = 8, 10, 6

    key = jax.random.PRNGKey(0)
    kx, kp = jax.random.split(key)
    x = jax.random.normal(kx, (N, CIN, H, W), jnp.float32)   # NCHW like PyTorch
    params = init_params(kp, CIN, COUT, NUM_CLASSES, FEATURE_SIZE)

    out = torch_builtin_model_forward(x, params)
    out = jax.block_until_ready(out)
    assert out.shape == (N, FEATURE_SIZE), out.shape
    assert out.dtype == jnp.float32

    # Correctness check against a pure-f32 XLA reference; tolerance absorbs
    # the bf16 operand quantization (f32 accumulation keeps it small) while
    # still catching ordering / indexing bugs.
    ref = jax.block_until_ready(reference_forward(x, params))
    np.testing.assert_allclose(np.asarray(out), np.asarray(ref),
                               rtol=5e-2, atol=1e-2)
    print("KERNEL_OK")
</pallas_src>

<mosaic_0001>
module attributes {stable_mosaic.version = 11 : i64} {
  func.func @kernel(%arg0: i32, %arg1: i32, %arg2: i32, %arg3: memref<1x128x40xbf16, #tpu.memory_space<vmem>>, %arg4: memref<40x128xbf16, #tpu.memory_space<vmem>>, %arg5: memref<1x128xf32, #tpu.memory_space<vmem>>, %arg6: memref<1x1x1x128xf32, #tpu.memory_space<vmem>>, %arg7: memref<8x128xf32, #tpu.memory_space<vmem>>) attributes {dimension_semantics = [#tpu.dimension_semantics<parallel>, #tpu.dimension_semantics<parallel>, #tpu.dimension_semantics<arbitrary>], iteration_bounds = array<i64: 2, 2, 1>, scalar_prefetch = 0 : i64, scratch_operands = 1 : i64, tpu.core_type = #tpu.core_type<tc>, window_params = [{transform_indices = @transform_0, window_bounds = array<i64: 1, 128, 40>}, {pipeline_mode = #tpu.pipeline_mode<synchronous>, transform_indices = @transform_1, window_bounds = array<i64: 40, 128>}, {pipeline_mode = #tpu.pipeline_mode<synchronous>, transform_indices = @transform_2, window_bounds = array<i64: 1, 128>}, {transform_indices = @transform_3, window_bounds = array<i64: 1, 1, 1, 128>}]} {
    %c0_i32 = arith.constant 0 : i32
    %0 = arith.cmpi eq, %arg2, %c0_i32 : i32
    %1 = arith.extui %0 : i1 to i32
    %c0_i32_0 = arith.constant 0 : i32
    %2 = arith.cmpi ne, %1, %c0_i32_0 : i32
    scf.if %2 {
      %cst_15 = arith.constant 0.000000e+00 : f32
      %20 = vector.broadcast %cst_15 : f32 to vector<8x128xf32>
      %c0_16 = arith.constant 0 : index
      %c0_17 = arith.constant 0 : index
      %21 = vector.load %arg7[%c0_16, %c0_17] : memref<8x128xf32, #tpu.memory_space<vmem>>, vector<8x128xf32>
      tpu.vector_store %arg7[%c0_16, %c0_17], %20 {strides = array<i32>} : memref<8x128xf32, #tpu.memory_space<vmem>>, vector<8x128xf32>,
    } else {
    }
    %c0 = arith.constant 0 : index
    %c0_1 = arith.constant 0 : index
    %c0_2 = arith.constant 0 : index
    %3 = vector.load %arg3[%c0, %c0_1, %c0_2] : memref<1x128x40xbf16, #tpu.memory_space<vmem>>, vector<1x128x40xbf16>
    %4 = vector.shape_cast %3 : vector<1x128x40xbf16> to vector<128x40xbf16>
    %c0_3 = arith.constant 0 : index
    %c0_4 = arith.constant 0 : index
    %5 = vector.load %arg4[%c0_3, %c0_4] : memref<40x128xbf16, #tpu.memory_space<vmem>>, vector<40x128xbf16>
    %cst = arith.constant dense<0.000000e+00> : vector<128x128xf32>
    %6 = tpu.matmul %4, %5, %cst {dimension_numbers = #tpu.dot_dimension_numbers<[1], [0], [0], [1], [0, 0, 1, 1], [], []>} : vector<128x40xbf16>, vector<40x128xbf16>, vector<128x128xf32> -> vector<128x128xf32>
    %c0_5 = arith.constant 0 : index
    %c0_6 = arith.constant 0 : index
    %7 = vector.load %arg5[%c0_5, %c0_6] : memref<1x128xf32, #tpu.memory_space<vmem>>, vector<1x128xf32>
    %8 = vector.broadcast %7 : vector<1x128xf32> to vector<128x128xf32>
    %9 = arith.addf %6, %8 : vector<128x128xf32>
    %cst_7 = arith.constant 0.000000e+00 : f32
    %10 = vector.broadcast %cst_7 : f32 to vector<128x128xf32>
    %11 = arith.maximumf %9, %10 : vector<128x128xf32>
    %c0_8 = arith.constant 0 : index
    %c0_9 = arith.constant 0 : index
    %12 = vector.load %arg7[%c0_8, %c0_9] : memref<8x128xf32, #tpu.memory_space<vmem>>, vector<8x128xf32>
    %13 = vector.shape_cast %11 : vector<128x128xf32> to vector<16x8x128xf32>
    %cst_10 = arith.constant dense<0.000000e+00> : vector<8x128xf32>
    %14 = vector.multi_reduction <add>, %13, %cst_10 [0] : vector<16x8x128xf32> to vector<8x128xf32>
    %15 = arith.addf %12, %14 : vector<8x128xf32>
    %c0_11 = arith.constant 0 : index
    %c0_12 = arith.constant 0 : index
    %16 = vector.load %arg7[%c0_11, %c0_12] : memref<8x128xf32, #tpu.memory_space<vmem>>, vector<8x128xf32>
    tpu.vector_store %arg7[%c0_11, %c0_12], %15 {strides = array<i32>} : memref<8x128xf32, #tpu.memory_space<vmem>>, vector<8x128xf32>,
    %c0_i32_13 = arith.constant 0 : i32
    %17 = arith.cmpi eq, %arg2, %c0_i32_13 : i32
    %18 = arith.extui %17 : i1 to i32
    %c0_i32_14 = arith.constant 0 : i32
    %19 = arith.cmpi ne, %18, %c0_i32_14 : i32
    scf.if %19 {
      %c0_15 = arith.constant 0 : index
      %c0_16 = arith.constant 0 : index
      %20 = vector.load %arg7[%c0_15, %c0_16] : memref<8x128xf32, #tpu.memory_space<vmem>>, vector<8x128xf32>
      %cst_17 = arith.constant dense<0.000000e+00> : vector<128xf32>
      %21 = vector.multi_reduction <add>, %20, %cst_17 [0] : vector<8x128xf32> to vector<128xf32>
      %22 = vector.shape_cast %21 : vector<128xf32> to vector<1x128xf32>
      %cst_18 = arith.constant 3.906250e-03 : f32
      %23 = vector.broadcast %cst_18 : f32 to vector<1x128xf32>
      %24 = arith.mulf %22, %23 : vector<1x128xf32>
      %c0_19 = arith.constant 0 : index
      %c0_20 = arith.constant 0 : index
      %c0_21 = arith.constant 0 : index
      %c0_22 = arith.constant 0 : index
      %25 = vector.load %arg6[%c0_19, %c0_20, %c0_21, %c0_22] : memref<1x1x1x128xf32, #tpu.memory_space<vmem>>, vector<1x1x1x128xf32>
      %26 = vector.shape_cast %25 : vector<1x1x1x128xf32> to vector<1x128xf32>
      %27 = vector.shape_cast %24 : vector<1x128xf32> to vector<1x1x1x128xf32>
      tpu.vector_store %arg6[%c0_19, %c0_20, %c0_21, %c0_22], %27 {strides = array<i32>} : memref<1x1x1x128xf32, #tpu.memory_space<vmem>>, vector<1x1x1x128xf32>,
    } else {
    }
    return
  }
  func.func @transform_0(%arg0: i32, %arg1: i32, %arg2: i32) -> (i32, i32, i32) {
    %c1_i32 = arith.constant 1 : i32
    %0 = arith.muli %arg1, %c1_i32 : i32
    %1 = arith.addi %0, %arg2 : i32
    %c0_i32 = arith.constant 0 : i32
    %c0_i32_0 = arith.constant 0 : i32
    return %arg0, %1, %c0_i32 : i32, i32, i32
  }
  func.func @transform_1(%arg0: i32, %arg1: i32, %arg2: i32) -> (i32, i32) {
    %c0_i32 = arith.constant 0 : i32
    %c0_i32_0 = arith.constant 0 : i32
    %c0_i32_1 = arith.constant 0 : i32
    return %c0_i32, %c0_i32_0 : i32, i32
  }
  func.func @transform_2(%arg0: i32, %arg1: i32, %arg2: i32) -> (i32, i32) {
    %c0_i32 = arith.constant 0 : i32
    %c0_i32_0 = arith.constant 0 : i32
    %c0_i32_1 = arith.constant 0 : i32
    return %c0_i32, %c0_i32_0 : i32, i32
  }
  func.func @transform_3(%arg0: i32, %arg1: i32, %arg2: i32) -> (i32, i32, i32, i32) {
    %c0_i32 = arith.constant 0 : i32
    %c0_i32_0 = arith.constant 0 : i32
    %c0_i32_1 = arith.constant 0 : i32
    return %arg0, %arg1, %c0_i32, %c0_i32_0 : i32, i32, i32, i32
  }
}

</mosaic_0001>

<llo_original>
// kernel: torch_builtin_model_forward.1
$region0: #{torch_builtin_model_forward.1}
  #allocation0 [shape = 'u32[]', space=smem, size = 0x4, offset = 0x4, fixed_abs, tag = 'smem constant byte address 0x4 - core index']
  #allocation1 [shape = 'u32[144,128]{1,0:T(1,128)}', space=vmem, size = 0x12000, scoped, tag = 'internal scratch']
  #allocation2 [shape = 'f32[8,128]{1,0:T(8,128)}', space=vmem, size = 0x1000, scoped, tag = 'scratch operand']
  %s0 = inlined_call_operand.vmem [shape: bf16[2,256,40], index: 0, kind: input, shape index: {}]
  %s1 = inlined_call_operand.vmem [shape: bf16[40,128], index: 1, kind: input, shape index: {}]
  %s2 = inlined_call_operand.vmem [shape: f32[1,128], index: 2, kind: input, shape index: {}]
  %s3 = inlined_call_operand.vmem [shape: f32[2,2,1,128], index: 3, kind: output, shape index: {}]
  %s4 = sld [smem:[#allocation0]]
  $region53: #{torch_builtin_model_forward.1} parent=0
    _
  %s6 = ssub.s32 1, %s4
  %s7 = scalar_select 0, %s6, %s4
  loop: start=0, step=1, limit=6
  $region2: #{torch_builtin_model_forward.1} parent=0 // loop_pre_header
    _
  $region3: #{torch_builtin_model_forward.1} parent=0 // loop_header
    %s9 = sphi 0, %s13
    %p10 = scmp.ge.s32.totalorder %s9, 6
    %s16 = sphi 0, %s35
    %s17 = sphi 0, %s31
    %s18 = sphi 0, %s27
    %s19 = sphi 0, %s16
    %s20 = sphi 0, %s17
    %s21 = sphi 0, %s18
    %s22 = sphi 0, %s19
    %s23 = sphi 0, %s20
    %s24 = sphi 0, %s21
    %s42 = sphi 0, %s44
    %s45 = sphi 0, %s42
    %s46 = sphi 0, %s45
    %s62 = sphi 0, %s46
    %s66 = sphi 0, %s66
    %s68 = sphi 0, %s66
    %s69 = sphi 0, %s68
    %s83 = sphi 0, %s69
    %s87 = sphi 0, %s87
    %s89 = sphi 0, %s87
    %s90 = sphi 0, %s89
    %s104 = sphi 0, %s90
    %s112 = sphi 0, %s114
    %s115 = sphi 0, %s112
    %s116 = sphi 0, %s115
    %s132 = sphi 0, %s116
  $region4: #{torch_builtin_model_forward.1} parent=0 // loop_header_branch
    %12 = sbr.rel (%p10) target = $region8
  $region5: #{torch_builtin_model_forward.1} parent=0 // loop_body
    %s14 = ssub.s32 %s9, 1
    %s15 = ssub.s32 %s9, 2
    %s25 = sadd.s32 1, %s18
    %p26 = scmp.ge.s32.totalorder %s25, 1
    %s27 = scalar_select %p26, 0, %s25
    %s28 = sadd.s32 1, %s17
    %s29 = scalar_select %p26, %s28, %s17
    %p30 = scmp.ge.s32.totalorder %s29, 2
    %s31 = scalar_select %p30, 0, %s29
    %s32 = sadd.s32 1, %s16
    %s33 = scalar_select %p30, %s32, %s16
    %p34 = scmp.ge.s32.totalorder %s33, 2
    %s35 = scalar_select %p34, 0, %s33
    %s36 = sadd.s32 %s17, %s18
    %s37 = sadd.s32 %s31, %s27
    %s38 = ssub.s32 %s16, %s35
    %s39 = ssub.s32 %s36, %s37
    %s40 = sor.u32 %s38, %s39
    %p41 = scmp.eq.s32.totalorder %s40, 0
    %s43 = sadd.s32 %s42, 1
    %s44 = scalar_select %p41, %s42, %s43
    %p47 = pneg %p41
    %p48 = scmp.eq.s32.totalorder %s9, 3
    %p49 = por %p47, %p48
    %p50 = scmp.ne.s32.totalorder %s42, %s45
    %p51 = scmp.eq.s32.totalorder %s9, 0
    %p52 = por %p50, %p51
    %p53 = scmp.ne.s32.totalorder %s42, %s45
    %p54 = scmp.eq.s32.totalorder %s14, 3
    %p55 = por %p53, %p54
    %p56 = scmp.ne.s32.totalorder %s45, %s46
    %p57 = scmp.eq.s32.totalorder %s14, 0
    %p58 = por %p56, %p57
    %p59 = scmp.ne.s32.totalorder %s45, %s46
    %p60 = scmp.eq.s32.totalorder %s15, 3
    %p61 = por %p59, %p60
    %p63 = scmp.ne.s32.totalorder %s46, %s62
    %p64 = scmp.eq.s32.totalorder %s15, 0
    %p65 = por %p63, %p64
    %s67 = sadd.s32 %s66, 1
    %p70 = scmp.eq.s32.totalorder %s9, 3
    %p71 = scmp.ne.s32.totalorder %s66, %s68
    %p72 = scmp.eq.s32.totalorder %s9, 0
    %p73 = por %p71, %p72
    %p74 = scmp.ne.s32.totalorder %s66, %s68
    %p75 = scmp.eq.s32.totalorder %s14, 3
    %p76 = por %p74, %p75
    %p77 = scmp.ne.s32.totalorder %s68, %s69
    %p78 = scmp.eq.s32.totalorder %s14, 0
    %p79 = por %p77, %p78
    %p80 = scmp.ne.s32.totalorder %s68, %s69
    %p81 = scmp.eq.s32.totalorder %s15, 3
    %p82 = por %p80, %p81
    %p84 = scmp.ne.s32.totalorder %s69, %s83
    %p85 = scmp.eq.s32.totalorder %s15, 0
    %p86 = por %p84, %p85
    %s88 = sadd.s32 %s87, 1
    %p91 = scmp.eq.s32.totalorder %s9, 3
    %p92 = scmp.ne.s32.totalorder %s87, %s89
    %p93 = scmp.eq.s32.totalorder %s9, 0
    %p94 = por %p92, %p93
    %p95 = scmp.ne.s32.totalorder %s87, %s89
    %p96 = scmp.eq.s32.totalorder %s14, 3
    %p97 = por %p95, %p96
    %p98 = scmp.ne.s32.totalorder %s89, %s90
    %p99 = scmp.eq.s32.totalorder %s14, 0
    %p100 = por %p98, %p99
    %p101 = scmp.ne.s32.totalorder %s89, %s90
    %p102 = scmp.eq.s32.totalorder %s15, 3
    %p103 = por %p101, %p102
    %p105 = scmp.ne.s32.totalorder %s90, %s104
    %p106 = scmp.eq.s32.totalorder %s15, 0
    %p107 = por %p105, %p106
    %s108 = ssub.s32 %s16, %s35
    %s109 = ssub.s32 %s17, %s31
    %s110 = sor.u32 %s108, %s109
    %p111 = scmp.eq.s32.totalorder %s110, 0
    %s113 = sadd.s32 %s112, 1
    %s114 = scalar_select %p111, %s112, %s113
    %p117 = pneg %p111
    %p118 = scmp.eq.s32.totalorder %s9, 3
    %p119 = por %p117, %p118
    %p120 = scmp.ne.s32.totalorder %s112, %s115
    %p121 = scmp.eq.s32.totalorder %s9, 0
    %p122 = por %p120, %p121
    %p123 = scmp.ne.s32.totalorder %s112, %s115
    %p124 = scmp.eq.s32.totalorder %s14, 3
    %p125 = por %p123, %p124
    %p126 = scmp.ne.s32.totalorder %s115, %s116
    %p127 = scmp.eq.s32.totalorder %s14, 0
    %p128 = por %p126, %p127
    %p129 = scmp.ne.s32.totalorder %s115, %s116
    %p130 = scmp.eq.s32.totalorder %s15, 3
    %p131 = por %p129, %p130
    %p133 = scmp.ne.s32.totalorder %s116, %s132
    %p134 = scmp.eq.s32.totalorder %s15, 0
    %p135 = por %p133, %p134
    %p136 = scmp.le.s32.totalorder 1, %s9
    %p137 = scmp.lt.s32.totalorder %s9, 5
    %p138 = pnand %p136, %p137
    %p139 = pneg %p138
    // Predicated region
    $region9: #{torch_builtin_model_forward.1} parent=5 // pred_check
      _
    $region10: #{torch_builtin_model_forward.1} parent=5 // pred_check_branch
      %141 = sbr.rel (%p138) target = $region12
    $region11: #{torch_builtin_model_forward.1} parent=5 // pred_region
      %s142 = ssub.s32 %s9, 1
      // Predicated region
      $region13: #{torch_builtin_model_forward.1} parent=11 // pred_check
        %p143 = pneg %p79
      $region14: #{torch_builtin_model_forward.1} parent=11 // pred_check_branch
        %145 = sbr.rel (%p143) target = $region16
      $region15: #{torch_builtin_model_forward.1} parent=11 // pred_region
        _
      $region16: #{torch_builtin_model_forward.1} parent=11 // pred_fallthru
        _
      // Predicated region
      $region17: #{torch_builtin_model_forward.1} parent=11 // pred_check
        %p146 = pneg %p100
      $region18: #{torch_builtin_model_forward.1} parent=11 // pred_check_branch
        %148 = sbr.rel (%p146) target = $region20
      $region19: #{torch_builtin_model_forward.1} parent=11 // pred_region
        _
      $region20: #{torch_builtin_model_forward.1} parent=11 // pred_fallthru
        _
    $region12: #{torch_builtin_model_forward.1} parent=5 // pred_fallthru
      _
    %p149 = scmp.lt.s32.totalorder %s9, 4
    // Predicated region
    $region21: #{torch_builtin_model_forward.1} parent=5 // pred_check
      %p150 = pneg %p149
    $region22: #{torch_builtin_model_forward.1} parent=5 // pred_check_branch
      %152 = sbr.rel (%p150) target = $region24
    $region23: #{torch_builtin_model_forward.1} parent=5 // pred_region
      // Predicated region
      $region25: #{torch_builtin_model_forward.1} parent=23 // pred_check
        %p153 = pneg %p52
      $region26: #{torch_builtin_model_forward.1} parent=23 // pred_check_branch
        %155 = sbr.rel (%p153) target = $region28
      $region27: #{torch_builtin_model_forward.1} parent=23 // pred_region
        %s156 = sadd.s32 %s17, %s18
        %s157 = smul.u32 16, %s156
        %p158 = scmp.lt.s32.totalorder %s16, 1
        %s159 = scalar_select %p158, %s16, 1
        %p160 = scmp.lt.s32.totalorder %s157, 31
        %s161 = scalar_select %p160, %s157, 31
        %s162 = smul.addr %s159, 32
        %s163 = sadd.s32 %s161, %s162
        %s164 = smul.addr %s163, 4
        %s165 = scalar_lea.vmem %s0, %s164
        %s166 = sadd.s32 %s17, %s18
        %s167 = smul.u32 16, %s166
      $region28: #{torch_builtin_model_forward.1} parent=23 // pred_fallthru
        _
    $region24: #{torch_builtin_model_forward.1} parent=5 // pred_fallthru
      _
    %p168 = scmp.le.s32.totalorder 1, %s9
    %p169 = scmp.lt.s32.totalorder %s9, 5
    %p170 = pnand %p168, %p169
    %p171 = pneg %p170
    // Predicated region
    $region29: #{torch_builtin_model_forward.1} parent=5 // pred_check
      _
    $region30: #{torch_builtin_model_forward.1} parent=5 // pred_check_branch
      %173 = sbr.rel (%p170) target = $region32
    $region31: #{torch_builtin_model_forward.1} parent=5 // pred_region
      %s174 = ssub.s32 %s9, 1
      %s175 = sadd.s32 %s20, %s21
      %s176 = smul.u32 16, %s175
      %p177 = scmp.lt.s32.totalorder %s19, 1
      %s178 = scalar_select %p177, %s19, 1
      %p179 = scmp.lt.s32.totalorder %s176, 31
      %s180 = scalar_select %p179, %s176, 31
      %s181 = smul.addr %s178, 32
      %s182 = sadd.s32 %s180, %s181
      %s183 = smul.addr %s182, 4
      %s184 = scalar_lea.vmem %s0, %s183
      %p185 = pneg %p58
      %p186 = pneg %p55
      %p187 = pneg %p79
      %p188 = pneg %p76
      %p189 = pneg %p100
      %p190 = pneg %p97
      %p191 = pneg %p128
      %p192 = pneg %p125
      %p193 = scmp.lt.s32.totalorder %s19, 1
      %s194 = scalar_select %p193, %s19, 1
      %p195 = scmp.lt.s32.totalorder %s20, 1
      %s196 = scalar_select %p195, %s20, 1
      %s197 = smul.addr %s194, 2
      %s198 = sadd.s32 %s196, %s197
      %s199 = scalar_lea.vmem %s3, %s198
      %s200 = sadd.s32 %s20, %s21
      %s201 = smul.u32 16, %s200
      %p202 = scmp.lt.s32.totalorder %s19, 1
      %s203 = scalar_select %p202, %s19, 1
      %p204 = scmp.lt.s32.totalorder %s201, 31
      %s205 = scalar_select %p204, %s201, 31
      %s206 = smul.addr %s203, 32
      %s207 = sadd.s32 %s205, %s206
      %s208 = smul.addr %s207, 4
      %s209 = scalar_lea.vmem %s0, %s208
      %s210 = sadd.s32 %s20, %s21
      %s211 = smul.u32 16, %s210
      %p212 = scmp.lt.s32.totalorder %s19, 1
      %s213 = scalar_select %p212, %s19, 1
      %p214 = scmp.lt.s32.totalorder %s20, 1
      %s215 = scalar_select %p214, %s20, 1
      %s216 = smul.addr %s213, 2
      %s217 = sadd.s32 %s215, %s216
      %s218 = scalar_lea.vmem %s3, %s217
      %p220 = scmp.eq.s32.totalorder %s21, 0
      // Predicated region
      $region33: #{torch_builtin_model_forward.1} parent=31 // pred_check
        %p221 = pneg %p220
      $region34: #{torch_builtin_model_forward.1} parent=31 // pred_check_branch
        %223 = sbr.rel (%p221) target = $region36
      $region35: #{torch_builtin_model_forward.1} parent=31 // pred_region
        %224 = vst [vmem:[#allocation2] sm:$0xff] 0.0
      $region36: #{torch_builtin_model_forward.1} parent=31 // pred_fallthru
        _
      %v225 = vld [vmem:[%s209] sm:$0xf]
      %v226 = vld [vmem:[%s209 + $0x4] sm:$0xf]
      %v227 = vld [vmem:[%s209 + $0x8] sm:$0xf]
      %v228 = vld [vmem:[%s209 + $0xc] sm:$0xf]
      %v229 = vld [vmem:[%s209 + $0x10] sm:$0xf]
      %v230 = vld [vmem:[%s209 + $0x14] sm:$0xf]
      %v231 = vld [vmem:[%s209 + $0x18] sm:$0xf]
      %v232 = vld [vmem:[%s209 + $0x1c] sm:$0xf]
      %v233 = vld [vmem:[%s209 + $0x20] sm:$0xf]
      %v234 = vld [vmem:[%s209 + $0x24] sm:$0xf]
      %v235 = vld [vmem:[%s209 + $0x28] sm:$0xf]
      %v236 = vld [vmem:[%s209 + $0x2c] sm:$0xf]
      %v237 = vld [vmem:[%s209 + $0x30] sm:$0xf]
      %v238 = vld [vmem:[%s209 + $0x34] sm:$0xf]
      %v239 = vld [vmem:[%s209 + $0x38] sm:$0xf]
      %v240 = vld [vmem:[%s209 + $0x3c] sm:$0xf]
      %v241 = vld [vmem:[%s1] sm:$0xf]
      %v242 = vld [vmem:[%s1 + $0x4] sm:$0xf]
      %v243 = vld [vmem:[%s1 + $0x8] sm:$0xf]
      %v244 = vld [vmem:[%s1 + $0xc] sm:$0xf]
      %v245 = vld [vmem:[%s1 + $0x10] sm:$0xf]
      %v246 = vld [vmem:[%s2] sm:$0x1]
      %v248 = vlaneseq
      %v249 = vshrl.u32 %v248, 7
      %v250 = vsub.s32 0, %v249
      %v251 = vrot.slane %v246, %v250
      %v269 = vunpack.c.l.b16 %v225
      %v270 = vunpack.c.l.b16 %v226
      %v271 = vunpack.c.l.b16 %v227
      %v272 = vunpack.c.l.b16 %v228
      %v273 = vunpack.c.l.b16 %v229
      %v274 = vunpack.c.l.b16 %v230
      %v275 = vunpack.c.l.b16 %v231
      %v276 = vunpack.c.l.b16 %v232
      %v277 = vunpack.c.l.b16 %v233
      %v278 = vunpack.c.l.b16 %v234
      %v279 = vunpack.c.l.b16 %v235
      %v280 = vunpack.c.l.b16 %v236
      %v281 = vunpack.c.l.b16 %v237
      %v282 = vunpack.c.l.b16 %v238
      %v283 = vunpack.c.l.b16 %v239
      %v284 = vunpack.c.l.b16 %v240
      %v285 = vpack.c.b16 %v270, %v269
      %v286 = vpack.c.b16 %v272, %v271
      %v287 = vpack.c.b16 %v274, %v273
      %v288 = vpack.c.b16 %v276, %v275
      %v289 = vpack.c.b16 %v278, %v277
      %v290 = vpack.c.b16 %v280, %v279
      %v291 = vpack.c.b16 %v282, %v281
      %v292 = vpack.c.b16 %v284, %v283
      %v298 = vunpack.c.l.b16 %v241
      %v299 = vunpack.c.l.b16 %v242
      %v300 = vunpack.c.l.b16 %v243
      %v301 = vunpack.c.l.b16 %v244
      %v302 = vunpack.c.l.b16 %v245
      %v303 = vpack.c.b16 %v299, %v298
      %v304 = vpack.c.b16 %v301, %v300
      %v305 = vpack.c.b16 %v302, %v302
      %vm308 = vcmask 326656
      %v310 = vsel %vm308, %v285, 0
      %v313 = vsel %vm308, %v286, 0
      %v316 = vsel %vm308, %v287, 0
      %v319 = vsel %vm308, %v288, 0
      %v322 = vsel %vm308, %v289, 0
      %v325 = vsel %vm308, %v290, 0
      %v328 = vsel %vm308, %v291, 0
      %v331 = vsel %vm308, %v292, 0
      %vm333 = vcmask 1043456
      %v335 = vsel %vm333, %v305, 0
      %337 = vmatprep.subr.bf16.mxu0 0
      %338 = vmatpush1.bf16.msra.mxu0 %v303
      %339 = vmatprep.subr.bf16.mxu0 0
      %340 = vmatpush1.bf16.msra.mxu0 %v304
      %341 = vmatprep.subr.bf16.mxu0 0
      %342 = vmatpush1.bf16.msra.mxu0 %v335
      %343 = vmatprep.subr.bf16.mxu0 0
      %344 = vmatpush1.bf16.msra.mxu0 0
      %345 = vmatprep.subr.bf16.mxu0 0
      %346 = vmatpush1.bf16.msra.mxu0 0
      %347 = vmatprep.subr.bf16.mxu0 0
      %348 = vmatpush1.bf16.msra.mxu0 0
      %349 = vmatprep.subr.bf16.mxu0 0
      %350 = vmatpush1.bf16.msra.mxu0 0
      %351 = vmatprep.subr.bf16.mxu0 0
      %352 = vmatpush1.bf16.msra.mxu0 0
      %353 = vmatprep.subr.bf16.mxu0 0
      %354 = vmatpush1.bf16.msra.mxu0 0
      %355 = vmatprep.subr.bf16.mxu0 0
      %356 = vmatpush1.bf16.msra.mxu0 0
      %357 = vmatprep.subr.bf16.mxu0 0
      %358 = vmatpush1.bf16.msra.mxu0 0
      %359 = vmatprep.subr.bf16.mxu0 0
      %360 = vmatpush1.bf16.msra.mxu0 0
      %361 = vmatprep.subr.bf16.mxu0 0
      %362 = vmatpush1.bf16.msra.mxu0 0
      %363 = vmatprep.subr.bf16.mxu0 0
      %364 = vmatpush1.bf16.msra.mxu0 0
      %365 = vmatprep.subr.bf16.mxu0 0
      %366 = vmatpush1.bf16.msra.mxu0 0
      %367 = vmatprep.subr.bf16.mxu0 0
      %368 = vmatpush1.bf16.msra.mxu0 0
      %369 = vmatprep.mubr.bf16.mxu0 0
      %370 = vmatmul.mubr.bf16.gmra.mrb[0].mxu0 %v310
      %v371 = vpop.f32.mrb[0].mxu0
      %v372 = vadd.f32 %v251, %v371
      %v373 = vpop.f32.mrb[0].mxu0
      %v374 = vpop.f32.mrb[0].mxu0
      %v375 = vadd.f32 %v251, %v374
      %v376 = vpop.f32.mrb[0].mxu0
      %377 = vmatprep.mubr.bf16.mxu0 0
      %378 = vmatmul.mubr.bf16.gmra.mrb[0].mxu0 %v313
      %v379 = vpop.f32.mrb[0].mxu0
      %v380 = vadd.f32 %v251, %v379
      %v381 = vpop.f32.mrb[0].mxu0
      %v382 = vpop.f32.mrb[0].mxu0
      %v383 = vadd.f32 %v251, %v382
      %v384 = vpop.f32.mrb[0].mxu0
      %385 = vmatprep.mubr.bf16.mxu0 0
      %386 = vmatmul.mubr.bf16.gmra.mrb[0].mxu0 %v316
      %v387 = vpop.f32.mrb[0].mxu0
      %v388 = vadd.f32 %v251, %v387
      %v389 = vpop.f32.mrb[0].mxu0
      %v390 = vpop.f32.mrb[0].mxu0
      %v391 = vadd.f32 %v251, %v390
      %v392 = vpop.f32.mrb[0].mxu0
      %393 = vmatprep.mubr.bf16.mxu0 0
      %394 = vmatmul.mubr.bf16.gmra.mrb[0].mxu0 %v319
      %v395 = vpop.f32.mrb[0].mxu0
      %v396 = vadd.f32 %v251, %v395
      %v397 = vpop.f32.mrb[0].mxu0
      %v398 = vpop.f32.mrb[0].mxu0
      %v399 = vadd.f32 %v251, %v398
      %v400 = vpop.f32.mrb[0].mxu0
      %401 = vmatprep.mubr.bf16.mxu0 0
      %402 = vmatmul.mubr.bf16.gmra.mrb[0].mxu0 %v322
      %v403 = vpop.f32.mrb[0].mxu0
      %v404 = vadd.f32 %v251, %v403
      %v405 = vpop.f32.mrb[0].mxu0
      %v406 = vpop.f32.mrb[0].mxu0
      %v407 = vadd.f32 %v251, %v406
      %v408 = vpop.f32.mrb[0].mxu0
      %409 = vmatprep.mubr.bf16.mxu0 0
      %410 = vmatmul.mubr.bf16.gmra.mrb[0].mxu0 %v325
      %v411 = vpop.f32.mrb[0].mxu0
      %v412 = vadd.f32 %v251, %v411
      %v413 = vpop.f32.mrb[0].mxu0
      %v414 = vpop.f32.mrb[0].mxu0
      %v415 = vadd.f32 %v251, %v414
      %v416 = vpop.f32.mrb[0].mxu0
      %417 = vmatprep.mubr.bf16.mxu0 0
      %418 = vmatmul.mubr.bf16.gmra.mrb[0].mxu0 %v328
      %v419 = vpop.f32.mrb[0].mxu0
      %v420 = vadd.f32 %v251, %v419
      %v421 = vpop.f32.mrb[0].mxu0
      %v422 = vpop.f32.mrb[0].mxu0
      %v423 = vadd.f32 %v251, %v422
      %v424 = vpop.f32.mrb[0].mxu0
      %425 = vmatprep.mubr.bf16.mxu0 0
      %426 = vmatmul.mubr.bf16.gmra.mrb[0].mxu0 %v331
      %v427 = vpop.f32.mrb[0].mxu0
      %v428 = vadd.f32 %v251, %v427
      %v429 = vpop.f32.mrb[0].mxu0
      %v430 = vpop.f32.mrb[0].mxu0
      %v431 = vadd.f32 %v251, %v430
      %v432 = vpop.f32.mrb[0].mxu0
      %433 = vdwg.mxu0
      %v434 = vmax.f32 %v372, 0.0
      %v435 = vmax.f32 %v375, 0.0
      %v436 = vmax.f32 %v380, 0.0
      %v437 = vmax.f32 %v383, 0.0
      %v438 = vmax.f32 %v388, 0.0
      %v439 = vmax.f32 %v391, 0.0
      %v440 = vmax.f32 %v396, 0.0
      %v441 = vmax.f32 %v399, 0.0
      %v442 = vmax.f32 %v404, 0.0
      %v443 = vmax.f32 %v407, 0.0
      %v444 = vmax.f32 %v412, 0.0
      %v445 = vmax.f32 %v415, 0.0
      %v446 = vmax.f32 %v420, 0.0
      %v447 = vmax.f32 %v423, 0.0
      %v448 = vmax.f32 %v428, 0.0
      %v449 = vmax.f32 %v431, 0.0
      %v450 = vld [vmem:[#allocation2] sm:$0xff]
      %v451 = vadd.f32 %v434, %v435
      %v452 = vadd.f32 %v451, %v436
      %v453 = vadd.f32 %v452, %v437
      %v454 = vadd.f32 %v453, %v438
      %v455 = vadd.f32 %v454, %v439
      %v456 = vadd.f32 %v455, %v440
      %v457 = vadd.f32 %v456, %v441
      %v458 = vadd.f32 %v457, %v442
      %v459 = vadd.f32 %v458, %v443
      %v460 = vadd.f32 %v459, %v444
      %v461 = vadd.f32 %v460, %v445
      %v462 = vadd.f32 %v461, %v446
      %v463 = vadd.f32 %v462, %v447
      %v464 = vadd.f32 %v463, %v448
      %v465 = vadd.f32 %v464, %v449
      %v466 = vadd.f32 %v450, %v465
      %467 = vst [vmem:[#allocation2] sm:$0xff] %v466
      // Predicated region
      $region37: #{torch_builtin_model_forward.1} parent=31 // pred_check
        %p468 = pneg %p220
      $region38: #{torch_builtin_model_forward.1} parent=31 // pred_check_branch
        %470 = sbr.rel (%p468) target = $region40
      $region39: #{torch_builtin_model_forward.1} parent=31 // pred_region
        %v471 = vld [vmem:[#allocation2] sm:$0xff]
        %v472 = vrot.slane %v471, 4
        %v473 = vadd.f32 %v471, %v472
        %v474 = vrot.slane %v473, 2
        %v475 = vadd.f32 %v473, %v474
        %v476 = vrot.slane %v475, 1
        %v477 = vadd.f32 %v475, %v476
        %v478 = vmul.f32 %v477, 0.00390625
        %479 = vst [vmem:[%s218] sm:$0x1] %v478
      $region40: #{torch_builtin_model_forward.1} parent=31 // pred_fallthru
        _
      %p480 = scmp.lt.s32.totalorder %s19, 1
      %s481 = scalar_select %p480, %s19, 1
      %p482 = scmp.lt.s32.totalorder %s20, 1
      %s483 = scalar_select %p482, %s20, 1
      %s484 = smul.addr %s481, 2
      %s485 = sadd.s32 %s483, %s484
      %s486 = scalar_lea.vmem %s3, %s485
      // Predicated region
      $region41: #{torch_builtin_model_forward.1} parent=31 // pred_check
        %p487 = pneg %p125
      $region42: #{torch_builtin_model_forward.1} parent=31 // pred_check_branch
        %489 = sbr.rel (%p487) target = $region44
      $region43: #{torch_builtin_model_forward.1} parent=31 // pred_region
        _
      $region44: #{torch_builtin_model_forward.1} parent=31 // pred_fallthru
        _
    $region32: #{torch_builtin_model_forward.1} parent=5 // pred_fallthru
      _
    %p490 = scmp.le.s32.totalorder 2, %s9
    // Predicated region
    $region45: #{torch_builtin_model_forward.1} parent=5 // pred_check
      %p491 = pneg %p490
    $region46: #{torch_builtin_model_forward.1} parent=5 // pred_check_branch
      %493 = sbr.rel (%p491) target = $region48
    $region47: #{torch_builtin_model_forward.1} parent=5 // pred_region
      %s494 = ssub.s32 %s9, 2
      // Predicated region
      $region49: #{torch_builtin_model_forward.1} parent=47 // pred_check
        %p495 = pneg %p131
      $region50: #{torch_builtin_model_forward.1} parent=47 // pred_check_branch
        %497 = sbr.rel (%p495) target = $region52
      $region51: #{torch_builtin_model_forward.1} parent=47 // pred_region
        %p498 = scmp.lt.s32.totalorder %s22, 1
        %s499 = scalar_select %p498, %s22, 1
        %p500 = scmp.lt.s32.totalorder %s23, 1
        %s501 = scalar_select %p500, %s23, 1
        %s502 = smul.addr %s499, 2
        %s503 = sadd.s32 %s501, %s502
        %s504 = scalar_lea.vmem %s3, %s503
      $region52: #{torch_builtin_model_forward.1} parent=47 // pred_fallthru
        _
    $region48: #{torch_builtin_model_forward.1} parent=5 // pred_fallthru
      _
  $region6: #{torch_builtin_model_forward.1} parent=0 // loop_footer
    %s13 = sadd.s32 1, %s9
  $region7: #{torch_builtin_model_forward.1} parent=0 // loop_footer_branch
    %8 = sbr.rel target = $region3
  $region8: #{torch_builtin_model_forward.1} parent=0 // loop_exit
    _

</llo_original>
